<compile_context>
chip_gen: v5e
topology: v5e:2x2
jax: 0.10.0
libtpu: 0.0.40
codegen_flags: <defaults>
</compile_context>

<pallas_src>
import jax
import jax.numpy as jnp
import numpy as np
from jax.experimental import pallas as pl
from jax.experimental.pallas import tpu as pltpu

ACTION_ENGINE_BACKWARD = 2
ACTION_ENGINE_FORWARD = 1
ACTION_STEER_LEFT = 3
ACTION_STEER_RIGHT = 4

STATE_ENGINE_BACKWARD_MAX = -10
STATE_ENGINE_FORWARD_MAX = -6
STATE_STEER_LEFT_MAX = -5
STATE_STEER_RIGHT_MAX = -1

MASKING = -1000000000.0

_TAIL = 10  # all flag columns live in the last 10 state entries

_PAIRS = (
    (STATE_ENGINE_BACKWARD_MAX, ACTION_ENGINE_BACKWARD),
    (STATE_ENGINE_FORWARD_MAX, ACTION_ENGINE_FORWARD),
    (STATE_STEER_LEFT_MAX, ACTION_STEER_LEFT),
    (STATE_STEER_RIGHT_MAX, ACTION_STEER_RIGHT),
)

# one input VMEM buffer stays under this; double-buffered that's 2x — still tiny
# against the 32 MiB scoped default (v5e/v6e: 128 MiB, v7x: 64 MiB physical).
_VMEM_BUF_BYTES = 8 * 1024 * 1024


# --------------------------- Pallas kernel (batched 2-D path) ---------------------------
def _mask_kernel(x_ref, o_ref):
    """Builds the action mask for one batch tile.

    x_ref: (tb, state_dim)     state rows, native dtype (batch on sublanes)
    o_ref: (tb, output_size)   float32 mask tile

    All four conditions are applied independently (2-D "apply-all" semantics).
    """
    s = x_ref.shape[1]
    x = x_ref[...]                                           # native dtype, no cast

    # Fill the whole tile with ones once, then overwrite the 4 action columns.
    o_ref[...] = jnp.ones(o_ref.shape, dtype=jnp.float32)
    for state_off, action in _PAIRS:
        flag = x[:, s + state_off : s + state_off + 1]       # (tb, 1) flag column
        o_ref[:, action:action + 1] = jnp.where(
            flag == 1, jnp.float32(MASKING), jnp.float32(1.0))


def _choose_tile(b, s, itemsize, batch_tile):
    """Pick the batch tile: whole batch unless a generous VMEM bound is exceeded."""
    vmem_cap_rows = max(8, _VMEM_BUF_BYTES // max(1, s * itemsize))
    if b <= batch_tile and b <= vmem_cap_rows:
        return b                                             # single grid step; block == full dims
    tb = min(batch_tile, vmem_cap_rows, b)
    return max(8, (tb // 8) * 8)                             # sublane-aligned partial blocks


def _boolean_mask_2d(x2, output_size, batch_tile):
    b, s = x2.shape
    if s < _TAIL:
        raise ValueError(f"state_dim must be >= {_TAIL} (got {s})")

    tb = _choose_tile(b, s, x2.dtype.itemsize, batch_tile)
    grid = (pl.cdiv(b, tb),)                                 # == (1,) for typical batches

    return pl.pallas_call(
        _mask_kernel,
        out_shape=jax.ShapeDtypeStruct((b, output_size), jnp.float32),
        grid=grid,
        in_specs=[pl.BlockSpec((tb, s), lambda i: (i, 0))],
        out_specs=pl.BlockSpec((tb, output_size), lambda i: (i, 0)),
        compiler_params=pltpu.CompilerParams(
            dimension_semantics=("arbitrary",)),             # 1 step usually; split is noise anyway
    )(x2)


# --------------------------- plain-jnp 1-D (elif-chained) path ---------------------------
def _boolean_mask_1d(x1, output_size):
    # Launch + DMA overhead of a pallas_call vastly exceeds producing 5 floats;
    # plain XLA is strictly faster here on every TPU generation.
    if x1.shape[0] < _TAIL:
        raise ValueError(f"state vector must have >= {_TAIL} entries (got {x1.shape[0]})")
    mask = jnp.ones((output_size,), dtype=jnp.float32)
    taken = jnp.zeros((), dtype=jnp.bool_)
    for state_off, action in _PAIRS:                         # elif order
        raw = x1[state_off] == 1
        fire = jnp.logical_and(raw, jnp.logical_not(taken))
        mask = mask.at[action].set(
            jnp.where(fire, jnp.float32(MASKING), mask[action]))
        taken = jnp.logical_or(taken, raw)
    return mask


# ------------------------------------ public wrapper ------------------------------------
def boolean_mask_layer(x, output_size, *, batch_tile=32768):
    """JAX/Pallas equivalent of BooleanMaskLayer.forward (float32 output)."""
    if output_size <= ACTION_STEER_RIGHT:
        # numpy reference would raise IndexError; jnp .at[] clamps silently, so check here.
        raise ValueError(f"output_size must be > {ACTION_STEER_RIGHT} (got {output_size})")
    x = jnp.squeeze(jnp.asarray(x))                          # native dtype kept; no f32 cast
    if x.ndim == 1:
        return _boolean_mask_1d(x, output_size)
    if x.ndim == 2:
        return _boolean_mask_2d(x, output_size, batch_tile)
    raise ValueError("BooleanMaskLayer expects 1-D or 2-D (after squeeze) input")


# ---------------------- pure numpy reference (for checking) ----------------------
def _ref_boolean_mask(x_np, output_size):
    x_np = np.squeeze(np.asarray(x_np, dtype=np.float32))
    if x_np.ndim == 1:
        mask = np.ones(output_size, dtype=np.float32)
        if x_np[STATE_ENGINE_BACKWARD_MAX] == 1.0:
            mask[ACTION_ENGINE_BACKWARD] = MASKING
        elif x_np[STATE_ENGINE_FORWARD_MAX] == 1.0:
            mask[ACTION_ENGINE_FORWARD] = MASKING
        elif x_np[STATE_STEER_LEFT_MAX] == 1.0:
            mask[ACTION_STEER_LEFT] = MASKING
        elif x_np[STATE_STEER_RIGHT_MAX] == 1.0:
            mask[ACTION_STEER_RIGHT] = MASKING
        return mask
    mask = np.ones((x_np.shape[0], output_size), dtype=np.float32)
    mask[np.where(x_np[:, STATE_ENGINE_BACKWARD_MAX] == 1.0), ACTION_ENGINE_BACKWARD] = MASKING
    mask[np.where(x_np[:, STATE_ENGINE_FORWARD_MAX] == 1.0), ACTION_ENGINE_FORWARD] = MASKING
    mask[np.where(x_np[:, STATE_STEER_LEFT_MAX] == 1.0), ACTION_STEER_LEFT] = MASKING
    mask[np.where(x_np[:, STATE_STEER_RIGHT_MAX] == 1.0), ACTION_STEER_RIGHT] = MASKING
    return mask


if __name__ == "__main__":
    output_size = 5  # actions 0..4
    key = jax.random.PRNGKey(0)
    k1, k2, k3 = jax.random.split(key, 3)

    # 2-D (batched) path — small batch, single grid step (block == full dims)
    x_small = (jax.random.uniform(k1, (16, 16)) > 0.5).astype(jnp.float32)
    m_small = jax.block_until_ready(boolean_mask_layer(x_small, output_size))
    np.testing.assert_allclose(np.asarray(m_small),
                               _ref_boolean_mask(np.asarray(x_small), output_size),
                               rtol=0, atol=0)

    # 2-D path — force a multi-step grid with a partial last tile (300 rows, tb=128)
    x_big = (jax.random.uniform(k2, (300, 24)) > 0.5).astype(jnp.float32)
    m_big = jax.block_until_ready(
        boolean_mask_layer(x_big, output_size, batch_tile=128))
    np.testing.assert_allclose(np.asarray(m_big),
                               _ref_boolean_mask(np.asarray(x_big), output_size),
                               rtol=0, atol=0)

    # 2-D path — same data through the default single-step config
    m_big1 = jax.block_until_ready(boolean_mask_layer(x_big, output_size))
    np.testing.assert_allclose(np.asarray(m_big1),
                               _ref_boolean_mask(np.asarray(x_big), output_size),
                               rtol=0, atol=0)

    # 1-D (squeezed) path — elif semantics, plain jnp
    x_1d = (jax.random.uniform(k3, (1, 1, 16)) > 0.5).astype(jnp.float32)
    m_1d = jax.block_until_ready(boolean_mask_layer(x_1d, output_size))
    np.testing.assert_allclose(np.asarray(m_1d),
                               _ref_boolean_mask(np.asarray(x_1d), output_size),
                               rtol=0, atol=0)

    print("KERNEL_OK")
</pallas_src>

<mosaic_0001>
module attributes {stable_mosaic.version = 11 : i64} {
  func.func @_mask_kernel(%arg0: i32, %arg1: memref<16x16xf32, #tpu.memory_space<vmem>>, %arg2: memref<16x5xf32, #tpu.memory_space<vmem>>) attributes {dimension_semantics = [#tpu.dimension_semantics<arbitrary>], iteration_bounds = array<i64: 1>, scalar_prefetch = 0 : i64, scratch_operands = 0 : i64, tpu.core_type = #tpu.core_type<tc>, window_params = [{transform_indices = @transform_0, window_bounds = array<i64: 16, 16>}, {transform_indices = @transform_1, window_bounds = array<i64: 16, 5>}]} {
    %c0 = arith.constant 0 : index
    %c0_0 = arith.constant 0 : index
    %0 = vector.load %arg1[%c0, %c0_0] : memref<16x16xf32, #tpu.memory_space<vmem>>, vector<16x16xf32>
    %cst = arith.constant 1.000000e+00 : f32
    %1 = vector.broadcast %cst : f32 to vector<16x5xf32>
    %c0_1 = arith.constant 0 : index
    %c0_2 = arith.constant 0 : index
    %2 = vector.load %arg2[%c0_1, %c0_2] : memref<16x5xf32, #tpu.memory_space<vmem>>, vector<16x5xf32>
    tpu.vector_store %arg2[%c0_1, %c0_2], %1 {strides = array<i32>} : memref<16x5xf32, #tpu.memory_space<vmem>>, vector<16x5xf32>,
    %3 = vector.extract_strided_slice %0 {offsets = [0, 6], sizes = [16, 1], strides = [1, 1]} : vector<16x16xf32> to vector<16x1xf32>
    %cst_3 = arith.constant 1.000000e+00 : f32
    %4 = vector.broadcast %cst_3 : f32 to vector<16x1xf32>
    %5 = arith.cmpf oeq, %3, %4 : vector<16x1xf32>
    %cst_4 = arith.constant -1.000000e+09 : f32
    %cst_5 = arith.constant 1.000000e+00 : f32
    %6 = vector.broadcast %cst_4 : f32 to vector<16x1xf32>
    %7 = vector.broadcast %cst_5 : f32 to vector<16x1xf32>
    %8 = arith.select %5, %6, %7 : vector<16x1xi1>, vector<16x1xf32>
    %c0_6 = arith.constant 0 : index
    %c2 = arith.constant 2 : index
    %9 = vector.load %arg2[%c0_6, %c2] : memref<16x5xf32, #tpu.memory_space<vmem>>, vector<16x1xf32>
    tpu.vector_store %arg2[%c0_6, %c2], %8 {strides = array<i32>} : memref<16x5xf32, #tpu.memory_space<vmem>>, vector<16x1xf32>,
    %10 = vector.extract_strided_slice %0 {offsets = [0, 10], sizes = [16, 1], strides = [1, 1]} : vector<16x16xf32> to vector<16x1xf32>
    %cst_7 = arith.constant 1.000000e+00 : f32
    %11 = vector.broadcast %cst_7 : f32 to vector<16x1xf32>
    %12 = arith.cmpf oeq, %10, %11 : vector<16x1xf32>
    %cst_8 = arith.constant -1.000000e+09 : f32
    %cst_9 = arith.constant 1.000000e+00 : f32
    %13 = vector.broadcast %cst_8 : f32 to vector<16x1xf32>
    %14 = vector.broadcast %cst_9 : f32 to vector<16x1xf32>
    %15 = arith.select %12, %13, %14 : vector<16x1xi1>, vector<16x1xf32>
    %c0_10 = arith.constant 0 : index
    %c1 = arith.constant 1 : index
    %16 = vector.load %arg2[%c0_10, %c1] : memref<16x5xf32, #tpu.memory_space<vmem>>, vector<16x1xf32>
    tpu.vector_store %arg2[%c0_10, %c1], %15 {strides = array<i32>} : memref<16x5xf32, #tpu.memory_space<vmem>>, vector<16x1xf32>,
    %17 = vector.extract_strided_slice %0 {offsets = [0, 11], sizes = [16, 1], strides = [1, 1]} : vector<16x16xf32> to vector<16x1xf32>
    %cst_11 = arith.constant 1.000000e+00 : f32
    %18 = vector.broadcast %cst_11 : f32 to vector<16x1xf32>
    %19 = arith.cmpf oeq, %17, %18 : vector<16x1xf32>
    %cst_12 = arith.constant -1.000000e+09 : f32
    %cst_13 = arith.constant 1.000000e+00 : f32
    %20 = vector.broadcast %cst_12 : f32 to vector<16x1xf32>
    %21 = vector.broadcast %cst_13 : f32 to vector<16x1xf32>
    %22 = arith.select %19, %20, %21 : vector<16x1xi1>, vector<16x1xf32>
    %c0_14 = arith.constant 0 : index
    %c3 = arith.constant 3 : index
    %23 = vector.load %arg2[%c0_14, %c3] : memref<16x5xf32, #tpu.memory_space<vmem>>, vector<16x1xf32>
    tpu.vector_store %arg2[%c0_14, %c3], %22 {strides = array<i32>} : memref<16x5xf32, #tpu.memory_space<vmem>>, vector<16x1xf32>,
    %24 = vector.extract_strided_slice %0 {offsets = [0, 15], sizes = [16, 1], strides = [1, 1]} : vector<16x16xf32> to vector<16x1xf32>
    %cst_15 = arith.constant 1.000000e+00 : f32
    %25 = vector.broadcast %cst_15 : f32 to vector<16x1xf32>
    %26 = arith.cmpf oeq, %24, %25 : vector<16x1xf32>
    %cst_16 = arith.constant -1.000000e+09 : f32
    %cst_17 = arith.constant 1.000000e+00 : f32
    %27 = vector.broadcast %cst_16 : f32 to vector<16x1xf32>
    %28 = vector.broadcast %cst_17 : f32 to vector<16x1xf32>
    %29 = arith.select %26, %27, %28 : vector<16x1xi1>, vector<16x1xf32>
    %c0_18 = arith.constant 0 : index
    %c4 = arith.constant 4 : index
    %30 = vector.load %arg2[%c0_18, %c4] : memref<16x5xf32, #tpu.memory_space<vmem>>, vector<16x1xf32>
    tpu.vector_store %arg2[%c0_18, %c4], %29 {strides = array<i32>} : memref<16x5xf32, #tpu.memory_space<vmem>>, vector<16x1xf32>,
    return
  }
  func.func @transform_0(%arg0: i32) -> (i32, i32) {
    %c0_i32 = arith.constant 0 : i32
    %c0_i32_0 = arith.constant 0 : i32
    return %arg0, %c0_i32 : i32, i32
  }
  func.func @transform_1(%arg0: i32) -> (i32, i32) {
    %c0_i32 = arith.constant 0 : i32
    %c0_i32_0 = arith.constant 0 : i32
    return %arg0, %c0_i32 : i32, i32
  }
}

</mosaic_0001>

<llo_original>
// kernel: tpu_custom_call.1
$region0: #{tpu_custom_call.1}
  #allocation0 [shape = 'u32[]', space=smem, size = 0x4, offset = 0x4, fixed_abs, tag = 'smem constant byte address 0x4 - core index']
  #allocation1 [shape = 'u32[72,128]{1,0:T(1,128)}', space=vmem, size = 0x9000, scoped, tag = 'internal scratch']
  %s0 = inlined_call_operand.hbm [shape: f32[16,16], index: 0, kind: input, shape index: {}]
  %s1 = inlined_call_operand.vmem [shape: f32[16,5], index: 1, kind: output, shape index: {}]
  %s2 = sld [smem:[#allocation0]]
  $region18: #{tpu_custom_call.1} parent=0
    _
  %s4 = ssub.s32 1, %s2
  %s5 = scalar_select 0, %s4, %s2
  $region1: #{tpu_custom_call.1} parent=0
    #allocation2 [shape = 'u8[8192]{0}', space=vmem, size = 0x2000, scoped, tag = 'input window, operand 0, single buffered']
    #allocation3 [shape = 's32[1]{0}', space=sflag, size = 0x4, scoped, tag = 'scoped memory for tpu_custom_call.1']
    %6 = vsyncpa [#allocation3], 0
    // Predicated region
    $region2: #{tpu_custom_call.1} parent=1 // pred_check
      _
    $region3: #{tpu_custom_call.1} parent=1 // pred_check_branch
      %8 = sbr.rel (0) target = $region5
    $region4: #{tpu_custom_call.1} parent=1 // pred_region
      %10 = vsyncadd [#allocation3], 0
      %s11 = sshll.u32 %s0, 4
      %s12 = int_to_ptr.hbm [resolvable:$true] %s11
      %s13 = sshll.u32 [#allocation2], 4
      %s14 = int_to_ptr.vmem [resolvable:$true] %s13
      %19 = dma.hbm_to_vmem [thread:$0]  %s12, 256, %s14, [#allocation3], 128, 128, 8
    $region5: #{tpu_custom_call.1} parent=1 // pred_fallthru
      _
    // Predicated region
    $region6: #{tpu_custom_call.1} parent=1 // pred_check
      _
    $region7: #{tpu_custom_call.1} parent=1 // pred_check_branch
      %21 = sbr.rel (0) target = $region9
    $region8: #{tpu_custom_call.1} parent=1 // pred_region
      %23 = dma.done [#allocation3], 256
    $region9: #{tpu_custom_call.1} parent=1 // pred_fallthru
      _
    %v24 = vld [vmem:[#allocation2] sm:$0xff]
    %v25 = vld [vmem:[#allocation2 + $0x8] sm:$0xff]
    %vm26 = vcmask 39936
    %27 = vst.msk [vmem:[%s1] sm:$0xff] %vm26, 1.0
    %28 = vst.msk [vmem:[%s1 + $0x8] sm:$0xff] %vm26, 1.0
    %vm29 = vcmp.eq.f32.partialorder %v24, 1.0
    %vm30 = vcmp.eq.f32.partialorder %v25, 1.0
    %v31 = vsel %vm29, -1e+09, 1.0
    %v32 = vsel %vm30, -1e+09, 1.0
    %35 = vrot.lane.b32.xlu0 %v31, 124
    %v36 = vpop.permute.xlu0 %35
    %37 = vrot.lane.b32.xlu0 %v32, 124
    %v38 = vpop.permute.xlu0 %37
    %vm41 = vcmask 23568
    %42 = vst.msk [vmem:[%s1] sm:$0xff] %vm41, %v36
    %43 = vst.msk [vmem:[%s1 + $0x8] sm:$0xff] %vm41, %v38
    %44 = vrot.lane.b32.xlu0 %v31, 119
    %v45 = vpop.permute.xlu0 %44
    %46 = vrot.lane.b32.xlu0 %v32, 119
    %v47 = vpop.permute.xlu0 %46
    %vm50 = vcmask 15368
    %51 = vst.msk [vmem:[%s1] sm:$0xff] %vm50, %v45
    %52 = vst.msk [vmem:[%s1 + $0x8] sm:$0xff] %vm50, %v47
    %53 = vrot.lane.b32.xlu0 %v31, 120
    %v54 = vpop.permute.xlu0 %53
    %55 = vrot.lane.b32.xlu0 %v32, 120
    %v56 = vpop.permute.xlu0 %55
    %vm59 = vcmask 31768
    %60 = vst.msk [vmem:[%s1] sm:$0xff] %vm59, %v54
    %61 = vst.msk [vmem:[%s1 + $0x8] sm:$0xff] %vm59, %v56
    %62 = vrot.lane.b32.xlu0 %v31, 117
    %v63 = vpop.permute.xlu0 %62
    %64 = vrot.lane.b32.xlu0 %v32, 117
    %v65 = vpop.permute.xlu0 %64
    %vm68 = vcmask 39968
    %69 = vst.msk [vmem:[%s1] sm:$0xff] %vm68, %v63
    %70 = vst.msk [vmem:[%s1 + $0x8] sm:$0xff] %vm68, %v65
    // Predicated region
    $region10: #{tpu_custom_call.1} parent=1 // pred_check
      _
    $region11: #{tpu_custom_call.1} parent=1 // pred_check_branch
      %72 = sbr.rel (0) target = $region13
    $region12: #{tpu_custom_call.1} parent=1 // pred_region
      _
    $region13: #{tpu_custom_call.1} parent=1 // pred_fallthru
      _
    // Predicated region
    $region14: #{tpu_custom_call.1} parent=1 // pred_check
      _
    $region15: #{tpu_custom_call.1} parent=1 // pred_check_branch
      %74 = sbr.rel (0) target = $region17
    $region16: #{tpu_custom_call.1} parent=1 // pred_region
      _
    $region17: #{tpu_custom_call.1} parent=1 // pred_fallthru
      _
    %75 = vsyncpa [#allocation3], 1

</llo_original>
